<compile_context>
chip_gen: v7x
topology: tpu7x:2x2x1
jax: 0.10.0
libtpu: 0.0.40
codegen_flags: <defaults>
</compile_context>

<pallas_src>
import jax
import jax.numpy as jnp
from jax.experimental import pallas as pl
from jax.experimental.pallas import tpu as pltpu

LN_EPS = 1e-5


def mlp_kernel(x_ref, ln_w_ref, ln_b_ref,
               up_w_ref, up_b_ref,
               gate_w_ref,
               down_w_ref, down_b_ref,
               o_ref,
               xn_sc):
    """One (M-tile, H-tile) grid step.

    x, LN params, down bias and the output tile have index_maps constant in j,
    so they stay VMEM-resident across the whole H reduction; only the three
    weight slabs (and the tiny up-bias slab) stream per step.
    """
    j = pl.program_id(1)

    # ---- Per-M-tile init: LayerNorm once, zero the resident output tile ----
    @pl.when(j == 0)
    def _init():
        x = x_ref[...]                                            # [tm, D] f32
        mean = jnp.mean(x, axis=-1, keepdims=True)
        var = jnp.mean((x - mean) * (x - mean), axis=-1, keepdims=True)
        xn = (x - mean) * jax.lax.rsqrt(var + LN_EPS)
        xn = xn * ln_w_ref[...] + ln_b_ref[...]
        xn_sc[...] = xn.astype(jnp.bfloat16)     # up_proj operand, reused over j
        o_ref[...] = jnp.zeros_like(o_ref)       # f32 accumulator (VMEM-resident)

    # ---- Per-(i, j) step: up / gate / silu / partial down_proj -------------
    # up_proj(LN(x)) slab: [tm, D] @ [D, th] + [1, th]  (bf16 in, f32 acc)
    up = jnp.dot(xn_sc[...], up_w_ref[...],
                 preferred_element_type=jnp.float32) + up_b_ref[...]
    # gate_proj takes the *un-normalized* x (matches the PyTorch module);
    # per-step bf16 cast of the resident x tile is a few VPU ops under the MXU.
    gate = jnp.dot(x_ref[...].astype(jnp.bfloat16), gate_w_ref[...],
                   preferred_element_type=jnp.float32)
    h = up * (gate * jax.nn.sigmoid(gate))                        # [tm, th] f32

    # Partial down_proj accumulated over H tiles directly into o_ref (f32).
    o_ref[...] += jnp.dot(h.astype(jnp.bfloat16), down_w_ref[...],
                          preferred_element_type=jnp.float32)

    # ---- Finalize: add down_proj bias exactly once ---------------------------
    @pl.when(j == pl.num_programs(1) - 1)
    def _finalize():
        o_ref[...] += down_b_ref[...]


def _round_up(x, m):
    return (x + m - 1) // m * m


def _cdiv(a, b):
    return -(-a // b)


def _tpu_generation():
    """Best-effort generation sniff; conservative defaults if unknown."""
    kind = ""
    try:
        kind = jax.devices()[0].device_kind.lower()
    except Exception:
        pass
    if "v7" in kind:
        return {"name": "v7x", "vmem_bytes": 64 << 20, "mxu_n": 256, "cores": 2}
    if "v6" in kind:
        return {"name": "v6e", "vmem_bytes": 128 << 20, "mxu_n": 256, "cores": 1}
    if "v5" in kind:
        return {"name": "v5e", "vmem_bytes": 128 << 20, "mxu_n": 128, "cores": 1}
    # Unknown: assume the tightest (v7x-like) VMEM so we never overflow.
    return {"name": "unknown", "vmem_bytes": 64 << 20, "mxu_n": 256, "cores": 1}


def _vmem_estimate(tm, th, D, weight_buffers=2):
    x_io = 2 * tm * D * 4                                 # double-buffered f32 x
    out_io = 2 * tm * D * 4                               # double-buffered f32 out
    w = weight_buffers * (2 * D * th + th * D) * 2        # up/gate/down bf16 slabs
    small = 2 * (th + 3 * D) * 4                          # biases / LN params
    scratch = tm * D * 2                                  # xn_sc (bf16)
    return x_io + out_io + w + small + scratch


def _pick_tiles(M, D, H, *, vmem_budget, mxu_n, cores, weight_buffers):
    Mp = _round_up(M, 8)
    Hp = _round_up(H, 128)

    th_cands = [t for t in (512, 256, 128) if t <= Hp] or [Hp]
    if mxu_n >= 256:
        # 256x256 MXU (v6e/v7x): prefer 256-multiples, keep 128 as last resort.
        th_cands = sorted(th_cands, key=lambda t: (t % 256 != 0, -t))
    else:
        th_cands = sorted(th_cands, key=lambda t: -t)

    tm_cands = [t for t in (1024, 768, 640, 512, 384, 256, 128, 64, 32, 16, 8)
                if t <= Mp] or [Mp]
    # Keep the "parallel" i axis shardable across TensorCores (v7x megacore).
    if cores > 1:
        sharded = [t for t in tm_cands if _cdiv(Mp, t) >= cores]
        if sharded:
            tm_cands = sharded

    for tm in tm_cands:           # prefer large tm (arithmetic intensity ~ tm)
        for th in th_cands:       # then the widest MXU-friendly th that fits
            if _vmem_estimate(tm, th, D, weight_buffers) <= vmem_budget:
                return tm, th
    return tm_cands[-1], th_cands[-1]


def mlp_forward(x, params, *, tm=None, th=None, vmem_limit_bytes=None,
                weight_buffers=2):
    """x: [B, S, D] float32. params: dict of weights (see init_params)."""
    B, S, D = x.shape
    H = params["up_w"].shape[1]
    M = B * S

    gen = _tpu_generation()
    if vmem_limit_bytes is None:
        # Explicit scoped-VMEM limit: ~100 MiB on v5e/v6e, ~54 MiB on v7x.
        vmem_limit_bytes = min(100 << 20, int(gen["vmem_bytes"] * 0.85))
    if tm is None or th is None:
        budget = max(vmem_limit_bytes - (4 << 20), 1 << 20)
        auto_tm, auto_th = _pick_tiles(
            M, D, H, vmem_budget=budget, mxu_n=gen["mxu_n"],
            cores=gen["cores"], weight_buffers=weight_buffers)
        tm = tm if tm is not None else auto_tm
        th = th if th is not None else auto_th

    # Graceful handling of non-divisible M / H via zero padding (instead of a
    # full-extent fallback block that could blow VMEM).
    Mp = _round_up(M, tm)
    Hp = _round_up(H, th)

    x2d = x.reshape(M, D)
    if Mp != M:
        x2d = jnp.pad(x2d, ((0, Mp - M), (0, 0)))

    up_w, gate_w, down_w = params["up_w"], params["gate_w"], params["down_w"]
    up_b = params["up_b"]
    if Hp != H:
        up_w = jnp.pad(up_w, ((0, 0), (0, Hp - H)))
        gate_w = jnp.pad(gate_w, ((0, 0), (0, Hp - H)))
        down_w = jnp.pad(down_w, ((0, Hp - H), (0, 0)))
        up_b = jnp.pad(up_b, ((0, 0), (0, Hp - H)))

    grid_m, grid_h = Mp // tm, Hp // th

    cost = pl.CostEstimate(
        flops=6 * Mp * D * Hp,                    # 3 matmuls of M x D x H MACs
        transcendentals=Mp * Hp,                  # sigmoid
        bytes_accessed=grid_m * 3 * D * Hp * 2    # bf16 weights, re-streamed per M tile
        + 2 * Mp * D * 4                          # x read + output write (f32)
        + (2 * Hp + 3 * D) * 4,                   # biases / LN params
    )

    def wspec(shape, imap):
        # Deeper buffering only on the per-step weight streams, if requested.
        if weight_buffers and weight_buffers > 2:
            return pl.BlockSpec(shape, imap,
                                pipeline_mode=pl.Buffered(weight_buffers))
        return pl.BlockSpec(shape, imap)

    grid_spec = pltpu.PrefetchScalarGridSpec(
        num_scalar_prefetch=0,
        grid=(grid_m, grid_h),
        in_specs=[
            pl.BlockSpec((tm, D), lambda i, j: (i, 0)),    # x tile (const in j)
            pl.BlockSpec((1, D), lambda i, j: (0, 0)),     # LN weight
            pl.BlockSpec((1, D), lambda i, j: (0, 0)),     # LN bias
            wspec((D, th), lambda i, j: (0, j)),           # up_proj W slab
            pl.BlockSpec((1, th), lambda i, j: (0, j)),    # up_proj bias slab
            wspec((D, th), lambda i, j: (0, j)),           # gate_proj W slab
            wspec((th, D), lambda i, j: (j, 0)),           # down_proj W slab
            pl.BlockSpec((1, D), lambda i, j: (0, 0)),     # down_proj bias
        ],
        out_specs=pl.BlockSpec((tm, D), lambda i, j: (i, 0)),
        scratch_shapes=[
            pltpu.VMEM((tm, D), jnp.bfloat16),   # LN(x) tile, reused across H
        ],
    )

    # TODO(synk): optionally emit a bf16 output (halves writeback + resident
    # out buffer) once downstream consumers tolerate it; accumulation would
    # then need a separate f32 scratch.
    out2d = pl.pallas_call(
        mlp_kernel,
        out_shape=jax.ShapeDtypeStruct((Mp, D), x.dtype),
        grid_spec=grid_spec,
        compiler_params=pltpu.CompilerParams(
            dimension_semantics=("parallel", "arbitrary"),
            vmem_limit_bytes=vmem_limit_bytes),
        cost_estimate=cost,
    )(x2d,
      params["ln_w"], params["ln_b"],
      up_w, up_b,
      gate_w,
      down_w, params["down_b"])

    if Mp != M:
        out2d = out2d[:M]
    return out2d.reshape(B, S, D)


def init_params(key, dim, hidden):
    """Deterministic synthetic init matching nn.Module shapes.
    PyTorch Linear stores weight as [out, in]; we store pre-transposed
    [in, out], and keep the matmul weights in bf16 (cast ONCE here — not per
    forward call)."""
    k = jax.random.split(key, 5)
    sd = 1.0 / jnp.sqrt(dim)
    sh = 1.0 / jnp.sqrt(hidden)
    return {
        "ln_w":   jnp.ones((1, dim), jnp.float32),
        "ln_b":   jnp.zeros((1, dim), jnp.float32),
        "up_w":   jax.random.uniform(k[0], (dim, hidden), jnp.float32, -sd, sd
                                     ).astype(jnp.bfloat16),
        "up_b":   jax.random.uniform(k[1], (1, hidden), jnp.float32, -sd, sd),
        "gate_w": jax.random.uniform(k[2], (dim, hidden), jnp.float32, -sd, sd
                                     ).astype(jnp.bfloat16),
        "down_w": jax.random.uniform(k[3], (hidden, dim), jnp.float32, -sh, sh
                                     ).astype(jnp.bfloat16),
        "down_b": jax.random.uniform(k[4], (1, dim), jnp.float32, -sh, sh),
    }


def mlp_reference(x, params):
    """Pure-JAX f32 reference matching the PyTorch module semantics (weights
    upcast from their bf16 storage, so both paths see identical weights)."""
    mean = jnp.mean(x, axis=-1, keepdims=True)
    var = jnp.mean((x - mean) ** 2, axis=-1, keepdims=True)
    xn = (x - mean) * jax.lax.rsqrt(var + LN_EPS)
    xn = xn * params["ln_w"][0] + params["ln_b"][0]
    up = xn @ params["up_w"].astype(jnp.float32) + params["up_b"][0]
    gate = x @ params["gate_w"].astype(jnp.float32)
    h = up * (gate * jax.nn.sigmoid(gate))
    return h @ params["down_w"].astype(jnp.float32) + params["down_b"][0]


if __name__ == "__main__":
    key = jax.random.PRNGKey(0)
    k_x, k_p = jax.random.split(key)

    # Small but 128-aligned shapes: M = B*S = 16, D = 128, H = 256.
    B, S, dim, hidden = 2, 8, 128, 256
    x = jax.random.normal(k_x, (B, S, dim), jnp.float32)
    params = init_params(k_p, dim, hidden)
    ref = mlp_reference(x, params)

    # 1) Generation-aware auto-picked tiles (typically tm=8/16, th=256 here).
    out_auto = jax.block_until_ready(mlp_forward(x, params))
    # 2) Explicit small tiles to exercise multi-tile M AND the multi-step H
    #    reduction (accumulate-into-o_ref + finalize bias path).
    out_small = jax.block_until_ready(mlp_forward(x, params, tm=8, th=128))

    assert out_auto.shape == (B, S, dim)
    # bf16 matmul operands (f32 accumulation) vs the f32 reference.
    assert jnp.allclose(out_auto, ref, atol=2e-2, rtol=2e-2), "auto-tile mismatch"
    assert jnp.allclose(out_small, ref, atol=2e-2, rtol=2e-2), "small-tile mismatch"

    print("KERNEL_OK")
</pallas_src>

<mosaic_0001>
module attributes {stable_mosaic.version = 11 : i64} {
  func.func @mlp_kernel(%arg0: i32, %arg1: i32, %arg2: memref<16x128xf32, #tpu.memory_space<vmem>>, %arg3: memref<1x128xf32, #tpu.memory_space<vmem>>, %arg4: memref<1x128xf32, #tpu.memory_space<vmem>>, %arg5: memref<128x256xbf16, #tpu.memory_space<vmem>>, %arg6: memref<1x256xf32, #tpu.memory_space<vmem>>, %arg7: memref<128x256xbf16, #tpu.memory_space<vmem>>, %arg8: memref<256x128xbf16, #tpu.memory_space<vmem>>, %arg9: memref<1x128xf32, #tpu.memory_space<vmem>>, %arg10: memref<16x128xf32, #tpu.memory_space<vmem>>, %arg11: memref<16x128xbf16, #tpu.memory_space<vmem>>) attributes {dimension_semantics = [#tpu.dimension_semantics<parallel>, #tpu.dimension_semantics<arbitrary>], iteration_bounds = array<i64: 1, 1>, scalar_prefetch = 0 : i64, scratch_operands = 1 : i64, tpu.core_type = #tpu.core_type<tc>, window_params = [{transform_indices = @transform_0, window_bounds = array<i64: 16, 128>}, {pipeline_mode = #tpu.pipeline_mode<synchronous>, transform_indices = @transform_1, window_bounds = array<i64: 1, 128>}, {pipeline_mode = #tpu.pipeline_mode<synchronous>, transform_indices = @transform_2, window_bounds = array<i64: 1, 128>}, {transform_indices = @transform_3, window_bounds = array<i64: 128, 256>}, {transform_indices = @transform_4, window_bounds = array<i64: 1, 256>}, {transform_indices = @transform_5, window_bounds = array<i64: 128, 256>}, {transform_indices = @transform_6, window_bounds = array<i64: 256, 128>}, {pipeline_mode = #tpu.pipeline_mode<synchronous>, transform_indices = @transform_7, window_bounds = array<i64: 1, 128>}, {transform_indices = @transform_8, window_bounds = array<i64: 16, 128>}]} {
    %c0_i32 = arith.constant 0 : i32
    %0 = arith.cmpi eq, %arg1, %c0_i32 : i32
    %1 = arith.extui %0 : i1 to i32
    %c0_i32_0 = arith.constant 0 : i32
    %2 = arith.cmpi ne, %1, %c0_i32_0 : i32
    scf.if %2 {
      %c0_21 = arith.constant 0 : index
      %c0_22 = arith.constant 0 : index
      %29 = vector.load %arg2[%c0_21, %c0_22] : memref<16x128xf32, #tpu.memory_space<vmem>>, vector<16x128xf32>
      %cst_23 = arith.constant dense<0.000000e+00> : vector<16xf32>
      %30 = vector.multi_reduction <add>, %29, %cst_23 [1] : vector<16x128xf32> to vector<16xf32>
      %31 = vector.shape_cast %30 : vector<16xf32> to vector<16x1xf32>
      %cst_24 = arith.constant 1.280000e+02 : f32
      %32 = vector.broadcast %cst_24 : f32 to vector<16x1xf32>
      %33 = arith.divf %31, %32 : vector<16x1xf32>
      %34 = vector.broadcast %33 : vector<16x1xf32> to vector<16x128xf32>
      %35 = arith.subf %29, %34 : vector<16x128xf32>
      %36 = vector.broadcast %33 : vector<16x1xf32> to vector<16x128xf32>
      %37 = arith.subf %29, %36 : vector<16x128xf32>
      %38 = arith.mulf %35, %37 : vector<16x128xf32>
      %cst_25 = arith.constant dense<0.000000e+00> : vector<16xf32>
      %39 = vector.multi_reduction <add>, %38, %cst_25 [1] : vector<16x128xf32> to vector<16xf32>
      %40 = vector.shape_cast %39 : vector<16xf32> to vector<16x1xf32>
      %cst_26 = arith.constant 1.280000e+02 : f32
      %41 = vector.broadcast %cst_26 : f32 to vector<16x1xf32>
      %42 = arith.divf %40, %41 : vector<16x1xf32>
      %43 = vector.broadcast %33 : vector<16x1xf32> to vector<16x128xf32>
      %44 = arith.subf %29, %43 : vector<16x128xf32>
      %cst_27 = arith.constant 9.99999974E-6 : f32
      %45 = vector.broadcast %cst_27 : f32 to vector<16x1xf32>
      %46 = arith.addf %42, %45 : vector<16x1xf32>
      %47 = math.rsqrt %46 : vector<16x1xf32>
      %48 = vector.broadcast %47 : vector<16x1xf32> to vector<16x128xf32>
      %49 = arith.mulf %44, %48 : vector<16x128xf32>
      %c0_28 = arith.constant 0 : index
      %c0_29 = arith.constant 0 : index
      %50 = vector.load %arg3[%c0_28, %c0_29] : memref<1x128xf32, #tpu.memory_space<vmem>>, vector<1x128xf32>
      %51 = vector.broadcast %50 : vector<1x128xf32> to vector<16x128xf32>
      %52 = arith.mulf %49, %51 : vector<16x128xf32>
      %c0_30 = arith.constant 0 : index
      %c0_31 = arith.constant 0 : index
      %53 = vector.load %arg4[%c0_30, %c0_31] : memref<1x128xf32, #tpu.memory_space<vmem>>, vector<1x128xf32>
      %54 = vector.broadcast %53 : vector<1x128xf32> to vector<16x128xf32>
      %55 = arith.addf %52, %54 : vector<16x128xf32>
      %56 = arith.truncf %55 : vector<16x128xf32> to vector<16x128xbf16>
      %c0_32 = arith.constant 0 : index
      %c0_33 = arith.constant 0 : index
      %57 = vector.load %arg11[%c0_32, %c0_33] : memref<16x128xbf16, #tpu.memory_space<vmem>>, vector<16x128xbf16>
      tpu.vector_store %arg11[%c0_32, %c0_33], %56 {strides = array<i32>} : memref<16x128xbf16, #tpu.memory_space<vmem>>, vector<16x128xbf16>,
      %cst_34 = arith.constant 0.000000e+00 : f32
      %58 = vector.broadcast %cst_34 : f32 to vector<16x128xf32>
      %c0_35 = arith.constant 0 : index
      %c0_36 = arith.constant 0 : index
      %59 = vector.load %arg10[%c0_35, %c0_36] : memref<16x128xf32, #tpu.memory_space<vmem>>, vector<16x128xf32>
      tpu.vector_store %arg10[%c0_35, %c0_36], %58 {strides = array<i32>} : memref<16x128xf32, #tpu.memory_space<vmem>>, vector<16x128xf32>,
    } else {
    }
    %c0 = arith.constant 0 : index
    %c0_1 = arith.constant 0 : index
    %3 = vector.load %arg11[%c0, %c0_1] : memref<16x128xbf16, #tpu.memory_space<vmem>>, vector<16x128xbf16>
    %c0_2 = arith.constant 0 : index
    %c0_3 = arith.constant 0 : index
    %4 = vector.load %arg5[%c0_2, %c0_3] : memref<128x256xbf16, #tpu.memory_space<vmem>>, vector<128x256xbf16>
    %cst = arith.constant dense<0.000000e+00> : vector<16x256xf32>
    %5 = tpu.matmul %3, %4, %cst {dimension_numbers = #tpu.dot_dimension_numbers<[1], [0], [0], [1], [0, 0, 1, 1], [], []>} : vector<16x128xbf16>, vector<128x256xbf16>, vector<16x256xf32> -> vector<16x256xf32>
    %c0_4 = arith.constant 0 : index
    %c0_5 = arith.constant 0 : index
    %6 = vector.load %arg6[%c0_4, %c0_5] : memref<1x256xf32, #tpu.memory_space<vmem>>, vector<1x256xf32>
    %7 = vector.broadcast %6 : vector<1x256xf32> to vector<16x256xf32>
    %8 = arith.addf %5, %7 : vector<16x256xf32>
    %c0_6 = arith.constant 0 : index
    %c0_7 = arith.constant 0 : index
    %9 = vector.load %arg2[%c0_6, %c0_7] : memref<16x128xf32, #tpu.memory_space<vmem>>, vector<16x128xf32>
    %10 = arith.truncf %9 : vector<16x128xf32> to vector<16x128xbf16>
    %c0_8 = arith.constant 0 : index
    %c0_9 = arith.constant 0 : index
    %11 = vector.load %arg7[%c0_8, %c0_9] : memref<128x256xbf16, #tpu.memory_space<vmem>>, vector<128x256xbf16>
    %cst_10 = arith.constant dense<0.000000e+00> : vector<16x256xf32>
    %12 = tpu.matmul %10, %11, %cst_10 {dimension_numbers = #tpu.dot_dimension_numbers<[1], [0], [0], [1], [0, 0, 1, 1], [], []>} : vector<16x128xbf16>, vector<128x256xbf16>, vector<16x256xf32> -> vector<16x256xf32>
    %13 = arith.negf %12 : vector<16x256xf32>
    %14 = math.exp %13 : vector<16x256xf32>
    %cst_11 = arith.constant 1.000000e+00 : f32
    %15 = vector.broadcast %cst_11 : f32 to vector<16x256xf32>
    %16 = arith.addf %15, %14 : vector<16x256xf32>
    %17 = arith.divf %15, %16 : vector<16x256xf32>
    %18 = arith.mulf %12, %17 : vector<16x256xf32>
    %19 = arith.mulf %8, %18 : vector<16x256xf32>
    %c0_12 = arith.constant 0 : index
    %c0_13 = arith.constant 0 : index
    %20 = vector.load %arg10[%c0_12, %c0_13] : memref<16x128xf32, #tpu.memory_space<vmem>>, vector<16x128xf32>
    %21 = arith.truncf %19 : vector<16x256xf32> to vector<16x256xbf16>
    %c0_14 = arith.constant 0 : index
    %c0_15 = arith.constant 0 : index
    %22 = vector.load %arg8[%c0_14, %c0_15] : memref<256x128xbf16, #tpu.memory_space<vmem>>, vector<256x128xbf16>
    %cst_16 = arith.constant dense<0.000000e+00> : vector<16x128xf32>
    %23 = tpu.matmul %21, %22, %cst_16 {dimension_numbers = #tpu.dot_dimension_numbers<[1], [0], [0], [1], [0, 0, 1, 1], [], []>} : vector<16x256xbf16>, vector<256x128xbf16>, vector<16x128xf32> -> vector<16x128xf32>
    %24 = arith.addf %20, %23 : vector<16x128xf32>
    %c0_17 = arith.constant 0 : index
    %c0_18 = arith.constant 0 : index
    %25 = vector.load %arg10[%c0_17, %c0_18] : memref<16x128xf32, #tpu.memory_space<vmem>>, vector<16x128xf32>
    tpu.vector_store %arg10[%c0_17, %c0_18], %24 {strides = array<i32>} : memref<16x128xf32, #tpu.memory_space<vmem>>, vector<16x128xf32>,
    %c0_i32_19 = arith.constant 0 : i32
    %26 = arith.cmpi eq, %arg1, %c0_i32_19 : i32
    %27 = arith.extui %26 : i1 to i32
    %c0_i32_20 = arith.constant 0 : i32
    %28 = arith.cmpi ne, %27, %c0_i32_20 : i32
    scf.if %28 {
      %c0_21 = arith.constant 0 : index
      %c0_22 = arith.constant 0 : index
      %29 = vector.load %arg10[%c0_21, %c0_22] : memref<16x128xf32, #tpu.memory_space<vmem>>, vector<16x128xf32>
      %c0_23 = arith.constant 0 : index
      %c0_24 = arith.constant 0 : index
      %30 = vector.load %arg9[%c0_23, %c0_24] : memref<1x128xf32, #tpu.memory_space<vmem>>, vector<1x128xf32>
      %31 = vector.broadcast %30 : vector<1x128xf32> to vector<16x128xf32>
      %32 = arith.addf %29, %31 : vector<16x128xf32>
      %c0_25 = arith.constant 0 : index
      %c0_26 = arith.constant 0 : index
      %33 = vector.load %arg10[%c0_25, %c0_26] : memref<16x128xf32, #tpu.memory_space<vmem>>, vector<16x128xf32>
      tpu.vector_store %arg10[%c0_25, %c0_26], %32 {strides = array<i32>} : memref<16x128xf32, #tpu.memory_space<vmem>>, vector<16x128xf32>,
    } else {
    }
    return
  }
  func.func @transform_0(%arg0: i32, %arg1: i32) -> (i32, i32) {
    %c0_i32 = arith.constant 0 : i32
    %c0_i32_0 = arith.constant 0 : i32
    return %arg0, %c0_i32 : i32, i32
  }
  func.func @transform_1(%arg0: i32, %arg1: i32) -> (i32, i32) {
    %c0_i32 = arith.constant 0 : i32
    %c0_i32_0 = arith.constant 0 : i32
    %c0_i32_1 = arith.constant 0 : i32
    return %c0_i32, %c0_i32_0 : i32, i32
  }
  func.func @transform_2(%arg0: i32, %arg1: i32) -> (i32, i32) {
    %c0_i32 = arith.constant 0 : i32
    %c0_i32_0 = arith.constant 0 : i32
    %c0_i32_1 = arith.constant 0 : i32
    return %c0_i32, %c0_i32_0 : i32, i32
  }
  func.func @transform_3(%arg0: i32, %arg1: i32) -> (i32, i32) {
    %c0_i32 = arith.constant 0 : i32
    %c0_i32_0 = arith.constant 0 : i32
    return %c0_i32, %arg1 : i32, i32
  }
  func.func @transform_4(%arg0: i32, %arg1: i32) -> (i32, i32) {
    %c0_i32 = arith.constant 0 : i32
    %c0_i32_0 = arith.constant 0 : i32
    return %c0_i32, %arg1 : i32, i32
  }
  func.func @transform_5(%arg0: i32, %arg1: i32) -> (i32, i32) {
    %c0_i32 = arith.constant 0 : i32
    %c0_i32_0 = arith.constant 0 : i32
    return %c0_i32, %arg1 : i32, i32
  }
  func.func @transform_6(%arg0: i32, %arg1: i32) -> (i32, i32) {
    %c0_i32 = arith.constant 0 : i32
    %c0_i32_0 = arith.constant 0 : i32
    return %arg1, %c0_i32 : i32, i32
  }
  func.func @transform_7(%arg0: i32, %arg1: i32) -> (i32, i32) {
    %c0_i32 = arith.constant 0 : i32
    %c0_i32_0 = arith.constant 0 : i32
    %c0_i32_1 = arith.constant 0 : i32
    return %c0_i32, %c0_i32_0 : i32, i32
  }
  func.func @transform_8(%arg0: i32, %arg1: i32) -> (i32, i32) {
    %c0_i32 = arith.constant 0 : i32
    %c0_i32_0 = arith.constant 0 : i32
    return %arg0, %c0_i32 : i32, i32
  }
}

</mosaic_0001>

<llo_original>
// kernel: tpu_custom_call.1
$region0: #{tpu_custom_call.1}
  #allocation0 [shape = 'u32[]', space=smem, size = 0x4, offset = 0x4, fixed_abs, tag = 'smem constant byte address 0x4 - core index']
  #allocation1 [shape = 'u32[144,128]{1,0:T(1,128)}', space=vmem, size = 0x12000, scoped, tag = 'internal scratch']
  #allocation2 [shape = 'bf16[16,128]{1,0:T(16,128)(2,1)}', space=vmem, size = 0x1000, scoped, tag = 'scratch operand']
  %s0 = inlined_call_operand.hbm [shape: f32[16,128], index: 0, kind: input, shape index: {}]
  %s1 = inlined_call_operand.vmem [shape: f32[1,128], index: 1, kind: input, shape index: {}]
  %s2 = inlined_call_operand.vmem [shape: f32[1,128], index: 2, kind: input, shape index: {}]
  %s3 = inlined_call_operand.hbm [shape: bf16[128,256], index: 3, kind: input, shape index: {}]
  %s4 = inlined_call_operand.vmem [shape: f32[1,256], index: 4, kind: input, shape index: {}]
  %s5 = inlined_call_operand.hbm [shape: bf16[128,256], index: 5, kind: input, shape index: {}]
  %s6 = inlined_call_operand.hbm [shape: bf16[256,128], index: 6, kind: input, shape index: {}]
  %s7 = inlined_call_operand.vmem [shape: f32[1,128], index: 7, kind: input, shape index: {}]
  %s8 = inlined_call_operand.hbm [shape: f32[16,128], index: 8, kind: output, shape index: {}]
  %s9 = sld [smem:[#allocation0]]
  $region66: #{tpu_custom_call.1} parent=0
    _
  %s11 = ssub.s32 1, %s9
  %s12 = scalar_select 0, %s11, %s9
  $region1: #{tpu_custom_call.1} parent=0
    #allocation3 [shape = 'u8[8192]{0}', space=vmem, size = 0x2000, scoped, tag = 'input window, operand 0, single buffered']
    #allocation4 [shape = 's32[1]{0}', space=sflag, size = 0x4, scoped, tag = 'scoped memory for tpu_custom_call.1']
    #allocation5 [shape = 's32[1]{0}', space=sflag, size = 0x4, scoped, tag = 'scoped memory for tpu_custom_call.1']
    #allocation6 [shape = 'u8[65536]{0}', space=vmem, size = 0x10000, scoped, tag = 'input window, operand 3, single buffered']
    #allocation7 [shape = 's32[1]{0}', space=sflag, size = 0x4, scoped, tag = 'scoped memory for tpu_custom_call.1']
    #allocation8 [shape = 'u8[65536]{0}', space=vmem, size = 0x10000, scoped, tag = 'input window, operand 5, single buffered']
    #allocation9 [shape = 'u8[65536]{0}', space=vmem, size = 0x10000, scoped, tag = 'input window, operand 6, single buffered']
    #allocation10 [shape = 's32[1]{0}', space=sflag, size = 0x4, scoped, tag = 'scoped memory for tpu_custom_call.1']
    #allocation11 [shape = 'u8[8192]{0}', space=vmem, size = 0x2000, scoped, tag = 'output window, operand 0, single buffered']
    %13 = vsyncpa [#allocation4], 0
    %14 = vsyncpa [#allocation7], 0
    %15 = vsyncpa [#allocation10], 0
    %16 = vsyncpa [#allocation5], 0
    // Predicated region
    $region2: #{tpu_custom_call.1} parent=1 // pred_check
      _
    $region3: #{tpu_custom_call.1} parent=1 // pred_check_branch
      %18 = sbr.rel (0) target = $region5
    $region4: #{tpu_custom_call.1} parent=1 // pred_region
      %s20 = ssub.s32 256, 256
      %21 = vsyncadd [#allocation4], %s20
      %s22 = sshll.u32 [#allocation3], 4
      %s23 = int_to_ptr.vmem [resolvable:$true] %s22
      %28 = dma.hbm_to_vmem [thread:$0]  %s0, 256, %s23, [#allocation4], 128, 128, 8
    $region5: #{tpu_custom_call.1} parent=1 // pred_fallthru
      _
    // Predicated region
    $region6: #{tpu_custom_call.1} parent=1 // pred_check
      _
    $region7: #{tpu_custom_call.1} parent=1 // pred_check_branch
      %30 = sbr.rel (0) target = $region9
    $region8: #{tpu_custom_call.1} parent=1 // pred_region
      _
    $region9: #{tpu_custom_call.1} parent=1 // pred_fallthru
      _
    // Predicated region
    $region10: #{tpu_custom_call.1} parent=1 // pred_check
      _
    $region11: #{tpu_custom_call.1} parent=1 // pred_check_branch
      %32 = sbr.rel (0) target = $region13
    $region12: #{tpu_custom_call.1} parent=1 // pred_region
      _
    $region13: #{tpu_custom_call.1} parent=1 // pred_fallthru
      _
    // Predicated region
    $region14: #{tpu_custom_call.1} parent=1 // pred_check
      _
    $region15: #{tpu_custom_call.1} parent=1 // pred_check_branch
      %34 = sbr.rel (0) target = $region17
    $region16: #{tpu_custom_call.1} parent=1 // pred_region
      %s36 = ssub.s32 2048, 2048
      %37 = vsyncadd [#allocation7], %s36
      %s38 = sshll.u32 [#allocation6], 4
      %s39 = int_to_ptr.vmem [resolvable:$true] %s38
      %44 = dma.hbm_to_vmem [thread:$0]  %s3, 2048, %s39, [#allocation7], 128, 128, 8
    $region17: #{tpu_custom_call.1} parent=1 // pred_fallthru
      _
    // Predicated region
    $region18: #{tpu_custom_call.1} parent=1 // pred_check
      _
    $region19: #{tpu_custom_call.1} parent=1 // pred_check_branch
      %46 = sbr.rel (0) target = $region21
    $region20: #{tpu_custom_call.1} parent=1 // pred_region
      _
    $region21: #{tpu_custom_call.1} parent=1 // pred_fallthru
      _
    // Predicated region
    $region22: #{tpu_custom_call.1} parent=1 // pred_check
      _
    $region23: #{tpu_custom_call.1} parent=1 // pred_check_branch
      %48 = sbr.rel (0) target = $region25
    $region24: #{tpu_custom_call.1} parent=1 // pred_region
      %s50 = ssub.s32 2048, 2048
      %51 = vsyncadd [#allocation7], %s50
      %s52 = sshll.u32 [#allocation8], 4
      %s53 = int_to_ptr.vmem [resolvable:$true] %s52
      %58 = dma.hbm_to_vmem [thread:$0]  %s5, 2048, %s53, [#allocation7], 128, 128, 8
    $region25: #{tpu_custom_call.1} parent=1 // pred_fallthru
      _
    // Predicated region
    $region26: #{tpu_custom_call.1} parent=1 // pred_check
      _
    $region27: #{tpu_custom_call.1} parent=1 // pred_check_branch
      %60 = sbr.rel (0) target = $region29
    $region28: #{tpu_custom_call.1} parent=1 // pred_region
      %s62 = ssub.s32 2048, 2048
      %63 = vsyncadd [#allocation10], %s62
      %s64 = sshll.u32 [#allocation9], 4
      %s65 = int_to_ptr.vmem [resolvable:$true] %s64
      %70 = dma.hbm_to_vmem [thread:$0]  %s6, 2048, %s65, [#allocation10], 64, 64, 4
    $region29: #{tpu_custom_call.1} parent=1 // pred_fallthru
      _
    // Predicated region
    $region30: #{tpu_custom_call.1} parent=1 // pred_check
      _
    $region31: #{tpu_custom_call.1} parent=1 // pred_check_branch
      %72 = sbr.rel (0) target = $region33
    $region32: #{tpu_custom_call.1} parent=1 // pred_region
      _
    $region33: #{tpu_custom_call.1} parent=1 // pred_fallthru
      _
    // Predicated region
    $region34: #{tpu_custom_call.1} parent=1 // pred_check
      _
    $region35: #{tpu_custom_call.1} parent=1 // pred_check_branch
      %74 = sbr.rel (0) target = $region37
    $region36: #{tpu_custom_call.1} parent=1 // pred_region
      %75 = dma.done [#allocation4], 256
    $region37: #{tpu_custom_call.1} parent=1 // pred_fallthru
      _
    // Predicated region
    $region38: #{tpu_custom_call.1} parent=1 // pred_check
      _
    $region39: #{tpu_custom_call.1} parent=1 // pred_check_branch
      %77 = sbr.rel (0) target = $region41
    $region40: #{tpu_custom_call.1} parent=1 // pred_region
      %78 = dma.done [#allocation7], 2048
    $region41: #{tpu_custom_call.1} parent=1 // pred_fallthru
      _
    // Predicated region
    $region42: #{tpu_custom_call.1} parent=1 // pred_check
      _
    $region43: #{tpu_custom_call.1} parent=1 // pred_check_branch
      %80 = sbr.rel (0) target = $region45
    $region44: #{tpu_custom_call.1} parent=1 // pred_region
      %81 = dma.done [#allocation7], 2048
    $region45: #{tpu_custom_call.1} parent=1 // pred_fallthru
      _
    // Predicated region
    $region46: #{tpu_custom_call.1} parent=1 // pred_check
      _
    $region47: #{tpu_custom_call.1} parent=1 // pred_check_branch
      %83 = sbr.rel (0) target = $region49
    $region48: #{tpu_custom_call.1} parent=1 // pred_region
      %84 = dma.done [#allocation10], 2048
    $region49: #{tpu_custom_call.1} parent=1 // pred_fallthru
      _
    %p86 = scmp.eq.s32.totalorder 0, 0
    // Predicated region
    $region50: #{tpu_custom_call.1} parent=1 // pred_check
      %p87 = pneg %p86
    $region51: #{tpu_custom_call.1} parent=1 // pred_check_branch
      %89 = sbr.rel (%p87) target = $region53
    $region52: #{tpu_custom_call.1} parent=1 // pred_region
      %v90 = vld [vmem:[#allocation3] sm:$0xff]
      %v91 = vld [vmem:[#allocation3 + $0x8] sm:$0xff]
      %92 = vadd.xlane.f32.xlu0 %v90
      %v93 = vpop.xlane.xlu0 %92
      %94 = vadd.xlane.f32.xlu0 %v91
      %v95 = vpop.xlane.xlu0 %94
      %v96 = vrcp.pop 128.0
      %v97 = vmul.f32 %v93, %v96
      %v98 = vmul.f32 %v95, %v96
      %v99 = vsub.f32 %v90, %v97
      %v100 = vsub.f32 %v91, %v98
      %v101 = vmul.f32 %v99, %v99
      %v102 = vmul.f32 %v100, %v100
      %103 = vadd.xlane.f32.xlu0 %v101
      %v104 = vpop.xlane.xlu0 %103
      %105 = vadd.xlane.f32.xlu0 %v102
      %v106 = vpop.xlane.xlu0 %105
      %v107 = vmul.f32 %v104, %v96
      %v108 = vmul.f32 %v106, %v96
      %v109 = vadd.f32 %v107, 1e-05
      %v110 = vadd.f32 %v108, 1e-05
      %v111 = vrsqrt.pop %v109
      %v112 = vrsqrt.pop %v110
      %v113 = vmul.f32 %v99, %v111
      %v114 = vmul.f32 %v100, %v112
      %v115 = vld [vmem:[%s1] sm:$0x1]
      %v117 = vlaneseq
      %v118 = vshrl.u32 %v117, 7
      %v119 = vsub.s32 0, %v118
      %v120 = vrot.slane %v115, %v119
      %v122 = vmul.f32 %v113, %v120
      %v123 = vmul.f32 %v114, %v120
      %v124 = vld [vmem:[%s2] sm:$0x1]
      %v126 = vlaneseq
      %v127 = vshrl.u32 %v126, 7
      %v128 = vsub.s32 0, %v127
      %v129 = vrot.slane %v124, %v128
      %v131 = vadd.f32 %v122, %v129
      %v132 = vadd.f32 %v123, %v129
      %v133 = vpack.c.bf16 %v132, %v131
      %134 = vst [vmem:[#allocation2] sm:$0xff] %v133
      %135 = vst [vmem:[#allocation11] sm:$0xff] 0.0
      %136 = vst [vmem:[#allocation11 + $0x8] sm:$0xff] 0.0
    $region53: #{tpu_custom_call.1} parent=1 // pred_fallthru
      _
    %v137 = vld [vmem:[#allocation2] sm:$0xff]
    %v138 = vld [vmem:[#allocation6] sm:$0xff]
    %v139 = vld [vmem:[#allocation6 + $0x8] sm:$0xff]
    %v140 = vld [vmem:[#allocation6 + $0x10] sm:$0xff]
    %v141 = vld [vmem:[#allocation6 + $0x18] sm:$0xff]
    %v142 = vld [vmem:[#allocation6 + $0x20] sm:$0xff]
    %v143 = vld [vmem:[#allocation6 + $0x28] sm:$0xff]
    %v144 = vld [vmem:[#allocation6 + $0x30] sm:$0xff]
    %v145 = vld [vmem:[#allocation6 + $0x38] sm:$0xff]
    %v146 = vld [vmem:[#allocation6 + $0x40] sm:$0xff]
    %v147 = vld [vmem:[#allocation6 + $0x48] sm:$0xff]
    %v148 = vld [vmem:[#allocation6 + $0x50] sm:$0xff]
    %v149 = vld [vmem:[#allocation6 + $0x58] sm:$0xff]
    %v150 = vld [vmem:[#allocation6 + $0x60] sm:$0xff]
    %v151 = vld [vmem:[#allocation6 + $0x68] sm:$0xff]
    %v152 = vld [vmem:[#allocation6 + $0x70] sm:$0xff]
    %v153 = vld [vmem:[#allocation6 + $0x78] sm:$0xff]
    %v154 = vld [vmem:[%s4] sm:$0x3]
    %v156 = vlaneseq
    %v157 = vshrl.u32 %v156, 7
    %v158 = vsub.s32 0, %v157
    %v159 = vrot.slane %v154, %v158
    %v160 = vlaneseq
    %v161 = vshrl.u32 %v160, 7
    %v162 = vsub.s32 1, %v161
    %v163 = vrot.slane %v154, %v162
    %v182 = vunpack.c.l.b16 %v138
    %v183 = vunpack.c.h.b16 %v138
    %v184 = vunpack.c.l.b16 %v139
    %v185 = vunpack.c.h.b16 %v139
    %v186 = vunpack.c.l.b16 %v140
    %v187 = vunpack.c.h.b16 %v140
    %v188 = vunpack.c.l.b16 %v141
    %v189 = vunpack.c.h.b16 %v141
    %v190 = vunpack.c.l.b16 %v142
    %v191 = vunpack.c.h.b16 %v142
    %v192 = vunpack.c.l.b16 %v143
    %v193 = vunpack.c.h.b16 %v143
    %v194 = vunpack.c.l.b16 %v144
    %v195 = vunpack.c.h.b16 %v144
    %v196 = vunpack.c.l.b16 %v145
    %v197 = vunpack.c.h.b16 %v145
    %v198 = vunpack.c.l.b16 %v146
    %v199 = vunpack.c.h.b16 %v146
    %v200 = vunpack.c.l.b16 %v147
    %v201 = vunpack.c.h.b16 %v147
    %v202 = vunpack.c.l.b16 %v148
    %v203 = vunpack.c.h.b16 %v148
    %v204 = vunpack.c.l.b16 %v149
    %v205 = vunpack.c.h.b16 %v149
    %v206 = vunpack.c.l.b16 %v150
    %v207 = vunpack.c.h.b16 %v150
    %v208 = vunpack.c.l.b16 %v151
    %v209 = vunpack.c.h.b16 %v151
    %v210 = vunpack.c.l.b16 %v152
    %v211 = vunpack.c.h.b16 %v152
    %v212 = vunpack.c.l.b16 %v153
    %v213 = vunpack.c.h.b16 %v153
    %v214 = vpack.c.b16 %v184, %v182
    %v215 = vpack.c.b16 %v185, %v183
    %v216 = vpack.c.b16 %v188, %v186
    %v217 = vpack.c.b16 %v189, %v187
    %v218 = vpack.c.b16 %v192, %v190
    %v219 = vpack.c.b16 %v193, %v191
    %v220 = vpack.c.b16 %v196, %v194
    %v221 = vpack.c.b16 %v197, %v195
    %v222 = vpack.c.b16 %v200, %v198
    %v223 = vpack.c.b16 %v201, %v199
    %v224 = vpack.c.b16 %v204, %v202
    %v225 = vpack.c.b16 %v205, %v203
    %v226 = vpack.c.b16 %v208, %v206
    %v227 = vpack.c.b16 %v209, %v207
    %v228 = vpack.c.b16 %v212, %v210
    %v229 = vpack.c.b16 %v213, %v211
    %246 = vmatprep.subr.bf16.mxu0 %v215
    %247 = vmatpush1.bf16.msra.mxu0 %v214
    %248 = vmatprep.subr.bf16.mxu0 %v217
    %249 = vmatpush1.bf16.msra.mxu0 %v216
    %250 = vmatprep.subr.bf16.mxu0 %v219
    %251 = vmatpush1.bf16.msra.mxu0 %v218
    %252 = vmatprep.subr.bf16.mxu0 %v221
    %253 = vmatpush1.bf16.msra.mxu0 %v220
    %254 = vmatprep.subr.bf16.mxu0 %v223
    %255 = vmatpush1.bf16.msra.mxu0 %v222
    %256 = vmatprep.subr.bf16.mxu0 %v225
    %257 = vmatpush1.bf16.msra.mxu0 %v224
    %258 = vmatprep.subr.bf16.mxu0 %v227
    %259 = vmatpush1.bf16.msra.mxu0 %v226
    %260 = vmatprep.subr.bf16.mxu0 %v229
    %261 = vmatpush1.bf16.msra.mxu0 %v228
    %262 = vmatprep.subr.bf16.mxu0 0
    %263 = vmatpush1.bf16.msra.mxu0 0
    %264 = vmatprep.subr.bf16.mxu0 0
    %265 = vmatpush1.bf16.msra.mxu0 0
    %266 = vmatprep.subr.bf16.mxu0 0
    %267 = vmatpush1.bf16.msra.mxu0 0
    %268 = vmatprep.subr.bf16.mxu0 0
    %269 = vmatpush1.bf16.msra.mxu0 0
    %270 = vmatprep.subr.bf16.mxu0 0
    %271 = vmatpush1.bf16.msra.mxu0 0
    %272 = vmatprep.subr.bf16.mxu0 0
    %273 = vmatpush1.bf16.msra.mxu0 0
    %274 = vmatprep.subr.bf16.mxu0 0
    %275 = vmatpush1.bf16.msra.mxu0 0
    %276 = vmatprep.subr.bf16.mxu0 0
    %277 = vmatpush1.bf16.msra.mxu0 0
    %278 = vmatprep.mubr.bf16.mxu0 0
    %279 = vmatmul.mubr.bf16.gmra.mrb[0].mxu0 %v137
    %v280 = vpop.f32.mrb[0].mxu0
    %v281 = vadd.f32 %v159, %v280
    %v282 = vpop.f32.mrb[0].mxu0
    %v283 = vadd.f32 %v163, %v282
    %v284 = vpop.f32.mrb[0].mxu0
    %v285 = vadd.f32 %v159, %v284
    %v286 = vpop.f32.mrb[0].mxu0
    %v287 = vadd.f32 %v163, %v286
    %288 = vdwg.mxu0
    %v289 = vld [vmem:[#allocation3] sm:$0xff]
    %v290 = vld [vmem:[#allocation3 + $0x8] sm:$0xff]
    %v291 = vpack.c.bf16 %v290, %v289
    %v292 = vld [vmem:[#allocation8] sm:$0xff]
    %v293 = vld [vmem:[#allocation8 + $0x8] sm:$0xff]
    %v294 = vld [vmem:[#allocation8 + $0x10] sm:$0xff]
    %v295 = vld [vmem:[#allocation8 + $0x18] sm:$0xff]
    %v296 = vld [vmem:[#allocation8 + $0x20] sm:$0xff]
    %v297 = vld [vmem:[#allocation8 + $0x28] sm:$0xff]
    %v298 = vld [vmem:[#allocation8 + $0x30] sm:$0xff]
    %v299 = vld [vmem:[#allocation8 + $0x38] sm:$0xff]
    %v300 = vld [vmem:[#allocation8 + $0x40] sm:$0xff]
    %v301 = vld [vmem:[#allocation8 + $0x48] sm:$0xff]
    %v302 = vld [vmem:[#allocation8 + $0x50] sm:$0xff]
    %v303 = vld [vmem:[#allocation8 + $0x58] sm:$0xff]
    %v304 = vld [vmem:[#allocation8 + $0x60] sm:$0xff]
    %v305 = vld [vmem:[#allocation8 + $0x68] sm:$0xff]
    %v306 = vld [vmem:[#allocation8 + $0x70] sm:$0xff]
    %v307 = vld [vmem:[#allocation8 + $0x78] sm:$0xff]
    %v324 = vunpack.c.l.b16 %v292
    %v325 = vunpack.c.h.b16 %v292
    %v326 = vunpack.c.l.b16 %v293
    %v327 = vunpack.c.h.b16 %v293
    %v328 = vunpack.c.l.b16 %v294
    %v329 = vunpack.c.h.b16 %v294
    %v330 = vunpack.c.l.b16 %v295
    %v331 = vunpack.c.h.b16 %v295
    %v332 = vunpack.c.l.b16 %v296
    %v333 = vunpack.c.h.b16 %v296
    %v334 = vunpack.c.l.b16 %v297
    %v335 = vunpack.c.h.b16 %v297
    %v336 = vunpack.c.l.b16 %v298
    %v337 = vunpack.c.h.b16 %v298
    %v338 = vunpack.c.l.b16 %v299
    %v339 = vunpack.c.h.b16 %v299
    %v340 = vunpack.c.l.b16 %v300
    %v341 = vunpack.c.h.b16 %v300
    %v342 = vunpack.c.l.b16 %v301
    %v343 = vunpack.c.h.b16 %v301
    %v344 = vunpack.c.l.b16 %v302
    %v345 = vunpack.c.h.b16 %v302
    %v346 = vunpack.c.l.b16 %v303
    %v347 = vunpack.c.h.b16 %v303
    %v348 = vunpack.c.l.b16 %v304
    %v349 = vunpack.c.h.b16 %v304
    %v350 = vunpack.c.l.b16 %v305
    %v351 = vunpack.c.h.b16 %v305
    %v352 = vunpack.c.l.b16 %v306
    %v353 = vunpack.c.h.b16 %v306
    %v354 = vunpack.c.l.b16 %v307
    %v355 = vunpack.c.h.b16 %v307
    %v356 = vpack.c.b16 %v326, %v324
    %v357 = vpack.c.b16 %v327, %v325
    %v358 = vpack.c.b16 %v330, %v328
    %v359 = vpack.c.b16 %v331, %v329
    %v360 = vpack.c.b16 %v334, %v332
    %v361 = vpack.c.b16 %v335, %v333
    %v362 = vpack.c.b16 %v338, %v336
    %v363 = vpack.c.b16 %v339, %v337
    %v364 = vpack.c.b16 %v342, %v340
    %v365 = vpack.c.b16 %v343, %v341
    %v366 = vpack.c.b16 %v346, %v344
    %v367 = vpack.c.b16 %v347, %v345
    %v368 = vpack.c.b16 %v350, %v348
    %v369 = vpack.c.b16 %v351, %v349
    %v370 = vpack.c.b16 %v354, %v352
    %v371 = vpack.c.b16 %v355, %v353
    %388 = vmatprep.subr.bf16.mxu0 %v357
    %389 = vmatpush1.bf16.msra.mxu0 %v356
    %390 = vmatprep.subr.bf16.mxu0 %v359
    %391 = vmatpush1.bf16.msra.mxu0 %v358
    %392 = vmatprep.subr.bf16.mxu0 %v361
    %393 = vmatpush1.bf16.msra.mxu0 %v360
    %394 = vmatprep.subr.bf16.mxu0 %v363
    %395 = vmatpush1.bf16.msra.mxu0 %v362
    %396 = vmatprep.subr.bf16.mxu0 %v365
    %397 = vmatpush1.bf16.msra.mxu0 %v364
    %398 = vmatprep.subr.bf16.mxu0 %v367
    %399 = vmatpush1.bf16.msra.mxu0 %v366
    %400 = vmatprep.subr.bf16.mxu0 %v369
    %401 = vmatpush1.bf16.msra.mxu0 %v368
    %402 = vmatprep.subr.bf16.mxu0 %v371
    %403 = vmatpush1.bf16.msra.mxu0 %v370
    %404 = vmatprep.subr.bf16.mxu0 0
    %405 = vmatpush1.bf16.msra.mxu0 0
    %406 = vmatprep.subr.bf16.mxu0 0
    %407 = vmatpush1.bf16.msra.mxu0 0
    %408 = vmatprep.subr.bf16.mxu0 0
    %409 = vmatpush1.bf16.msra.mxu0 0
    %410 = vmatprep.subr.bf16.mxu0 0
    %411 = vmatpush1.bf16.msra.mxu0 0
    %412 = vmatprep.subr.bf16.mxu0 0
    %413 = vmatpush1.bf16.msra.mxu0 0
    %414 = vmatprep.subr.bf16.mxu0 0
    %415 = vmatpush1.bf16.msra.mxu0 0
    %416 = vmatprep.subr.bf16.mxu0 0
    %417 = vmatpush1.bf16.msra.mxu0 0
    %418 = vmatprep.subr.bf16.mxu0 0
    %419 = vmatpush1.bf16.msra.mxu0 0
    %420 = vmatprep.mubr.bf16.mxu0 0
    %421 = vmatmul.mubr.bf16.gmra.mrb[0].mxu0 %v291
    %v422 = vpop.f32.mrb[0].mxu0
    %v423 = vadd.f32 0.0, %v422
    %v424 = vpop.f32.mrb[0].mxu0
    %v425 = vadd.f32 0.0, %v424
    %v426 = vpop.f32.mrb[0].mxu0
    %v427 = vadd.f32 0.0, %v426
    %v428 = vpop.f32.mrb[0].mxu0
    %v429 = vadd.f32 0.0, %v428
    %430 = vdwg.mxu0
    %v431 = vxor.u32 %v423, 2147483648
    %v432 = vxor.u32 %v425, 2147483648
    %v433 = vxor.u32 %v427, 2147483648
    %v434 = vxor.u32 %v429, 2147483648
    %v435 = vmul.f32 %v431, 1.442695
    %v436 = vpow.pop %v435
    %v437 = vmul.f32 %v432, 1.442695
    %v438 = vpow.pop %v437
    %v439 = vmul.f32 %v433, 1.442695
    %v440 = vpow.pop %v439
    %v441 = vmul.f32 %v434, 1.442695
    %v442 = vpow.pop %v441
    %v443 = vadd.f32 %v436, 1.0
    %v444 = vadd.f32 %v438, 1.0
    %v445 = vadd.f32 %v440, 1.0
    %v446 = vadd.f32 %v442, 1.0
    %v447 = vrcp.pop %v443
    %v448 = vmul.f32 1.0, %v447
    %v449 = vrcp.pop %v444
    %v450 = vmul.f32 1.0, %v449
    %v451 = vrcp.pop %v445
    %v452 = vmul.f32 1.0, %v451
    %v453 = vrcp.pop %v446
    %v454 = vmul.f32 1.0, %v453
    %v455 = vmul.f32 %v423, %v448
    %v456 = vmul.f32 %v425, %v450
    %v457 = vmul.f32 %v427, %v452
    %v458 = vmul.f32 %v429, %v454
    %v459 = vmul.f32 %v281, %v455
    %v460 = vmul.f32 %v283, %v456
    %v461 = vmul.f32 %v285, %v457
    %v462 = vmul.f32 %v287, %v458
    %v463 = vld [vmem:[#allocation11] sm:$0xff]
    %v464 = vld [vmem:[#allocation11 + $0x8] sm:$0xff]
    %v465 = vpack.c.bf16 %v461, %v459
    %v466 = vpack.c.bf16 %v462, %v460
    %v467 = vld [vmem:[#allocation9] sm:$0xf]
    %v468 = vld [vmem:[#allocation9 + $0x4] sm:$0xf]
    %v469 = vld [vmem:[#allocation9 + $0x8] sm:$0xf]
    %v470 = vld [vmem:[#allocation9 + $0xc] sm:$0xf]
    %v471 = vld [vmem:[#allocation9 + $0x10] sm:$0xf]
    %v472 = vld [vmem:[#allocation9 + $0x14] sm:$0xf]
    %v473 = vld [vmem:[#allocation9 + $0x18] sm:$0xf]
    %v474 = vld [vmem:[#allocation9 + $0x1c] sm:$0xf]
    %v475 = vld [vmem:[#allocation9 + $0x20] sm:$0xf]
    %v476 = vld [vmem:[#allocation9 + $0x24] sm:$0xf]
    %v477 = vld [vmem:[#allocation9 + $0x28] sm:$0xf]
    %v478 = vld [vmem:[#allocation9 + $0x2c] sm:$0xf]
    %v479 = vld [vmem:[#allocation9 + $0x30] sm:$0xf]
    %v480 = vld [vmem:[#allocation9 + $0x34] sm:$0xf]
    %v481 = vld [vmem:[#allocation9 + $0x38] sm:$0xf]
    %v482 = vld [vmem:[#allocation9 + $0x3c] sm:$0xf]
    %v483 = vld [vmem:[#allocation9 + $0x40] sm:$0xf]
    %v484 = vld [vmem:[#allocation9 + $0x44] sm:$0xf]
    %v485 = vld [vmem:[#allocation9 + $0x48] sm:$0xf]
    %v486 = vld [vmem:[#allocation9 + $0x4c] sm:$0xf]
    %v487 = vld [vmem:[#allocation9 + $0x50] sm:$0xf]
    %v488 = vld [vmem:[#allocation9 + $0x54] sm:$0xf]
    %v489 = vld [vmem:[#allocation9 + $0x58] sm:$0xf]
    %v490 = vld [vmem:[#allocation9 + $0x5c] sm:$0xf]
    %v491 = vld [vmem:[#allocation9 + $0x60] sm:$0xf]
    %v492 = vld [vmem:[#allocation9 + $0x64] sm:$0xf]
    %v493 = vld [vmem:[#allocation9 + $0x68] sm:$0xf]
    %v494 = vld [vmem:[#allocation9 + $0x6c] sm:$0xf]
    %v495 = vld [vmem:[#allocation9 + $0x70] sm:$0xf]
    %v496 = vld [vmem:[#allocation9 + $0x74] sm:$0xf]
    %v497 = vld [vmem:[#allocation9 + $0x78] sm:$0xf]
    %v498 = vld [vmem:[#allocation9 + $0x7c] sm:$0xf]
    %v531 = vunpack.c.l.b16 %v467
    %v532 = vunpack.c.l.b16 %v468
    %v533 = vunpack.c.l.b16 %v469
    %v534 = vunpack.c.l.b16 %v470
    %v535 = vunpack.c.l.b16 %v471
    %v536 = vunpack.c.l.b16 %v472
    %v537 = vunpack.c.l.b16 %v473
    %v538 = vunpack.c.l.b16 %v474
    %v539 = vunpack.c.l.b16 %v475
    %v540 = vunpack.c.l.b16 %v476
    %v541 = vunpack.c.l.b16 %v477
    %v542 = vunpack.c.l.b16 %v478
    %v543 = vunpack.c.l.b16 %v479
    %v544 = vunpack.c.l.b16 %v480
    %v545 = vunpack.c.l.b16 %v481
    %v546 = vunpack.c.l.b16 %v482
    %v547 = vunpack.c.l.b16 %v483
    %v548 = vunpack.c.l.b16 %v484
    %v549 = vunpack.c.l.b16 %v485
    %v550 = vunpack.c.l.b16 %v486
    %v551 = vunpack.c.l.b16 %v487
    %v552 = vunpack.c.l.b16 %v488
    %v553 = vunpack.c.l.b16 %v489
    %v554 = vunpack.c.l.b16 %v490
    %v555 = vunpack.c.l.b16 %v491
    %v556 = vunpack.c.l.b16 %v492
    %v557 = vunpack.c.l.b16 %v493
    %v558 = vunpack.c.l.b16 %v494
    %v559 = vunpack.c.l.b16 %v495
    %v560 = vunpack.c.l.b16 %v496
    %v561 = vunpack.c.l.b16 %v497
    %v562 = vunpack.c.l.b16 %v498
    %v563 = vpack.c.b16 %v532, %v531
    %v564 = vpack.c.b16 %v534, %v533
    %v565 = vpack.c.b16 %v536, %v535
    %v566 = vpack.c.b16 %v538, %v537
    %v567 = vpack.c.b16 %v540, %v539
    %v568 = vpack.c.b16 %v542, %v541
    %v569 = vpack.c.b16 %v544, %v543
    %v570 = vpack.c.b16 %v546, %v545
    %v571 = vpack.c.b16 %v548, %v547
    %v572 = vpack.c.b16 %v550, %v549
    %v573 = vpack.c.b16 %v552, %v551
    %v574 = vpack.c.b16 %v554, %v553
    %v575 = vpack.c.b16 %v556, %v555
    %v576 = vpack.c.b16 %v558, %v557
    %v577 = vpack.c.b16 %v560, %v559
    %v578 = vpack.c.b16 %v562, %v561
    %595 = vmatprep.subr.bf16.mxu0 0
    %596 = vmatpush1.bf16.msra.mxu0 %v563
    %597 = vmatprep.subr.bf16.mxu0 0
    %598 = vmatpush1.bf16.msra.mxu0 %v564
    %599 = vmatprep.subr.bf16.mxu0 0
    %600 = vmatpush1.bf16.msra.mxu0 %v565
    %601 = vmatprep.subr.bf16.mxu0 0
    %602 = vmatpush1.bf16.msra.mxu0 %v566
    %603 = vmatprep.subr.bf16.mxu0 0
    %604 = vmatpush1.bf16.msra.mxu0 %v567
    %605 = vmatprep.subr.bf16.mxu0 0
    %606 = vmatpush1.bf16.msra.mxu0 %v568
    %607 = vmatprep.subr.bf16.mxu0 0
    %608 = vmatpush1.bf16.msra.mxu0 %v569
    %609 = vmatprep.subr.bf16.mxu0 0
    %610 = vmatpush1.bf16.msra.mxu0 %v570
    %611 = vmatprep.subr.bf16.mxu0 0
    %612 = vmatpush1.bf16.msra.mxu0 %v571
    %613 = vmatprep.subr.bf16.mxu0 0
    %614 = vmatpush1.bf16.msra.mxu0 %v572
    %615 = vmatprep.subr.bf16.mxu0 0
    %616 = vmatpush1.bf16.msra.mxu0 %v573
    %617 = vmatprep.subr.bf16.mxu0 0
    %618 = vmatpush1.bf16.msra.mxu0 %v574
    %619 = vmatprep.subr.bf16.mxu0 0
    %620 = vmatpush1.bf16.msra.mxu0 %v575
    %621 = vmatprep.subr.bf16.mxu0 0
    %622 = vmatpush1.bf16.msra.mxu0 %v576
    %623 = vmatprep.subr.bf16.mxu0 0
    %624 = vmatpush1.bf16.msra.mxu0 %v577
    %625 = vmatprep.subr.bf16.mxu0 0
    %626 = vmatpush1.bf16.msra.mxu0 %v578
    %627 = vmatprep.mubr.bf16.mxu0 %v466
    %628 = vmatmul.mubr.bf16.gmra.mrb[0].mxu0 %v465
    %v629 = vpop.f32.mrb[0].mxu0
    %v630 = vadd.f32 0.0, %v629
    %v631 = vpop.f32.mrb[0].mxu0
    %v632 = vpop.f32.mrb[0].mxu0
    %v633 = vadd.f32 0.0, %v632
    %v634 = vpop.f32.mrb[0].mxu0
    %635 = vdwg.mxu0
    %v636 = vadd.f32 %v463, %v630
    %v637 = vadd.f32 %v464, %v633
    %638 = vst [vmem:[#allocation11] sm:$0xff] %v636
    %639 = vst [vmem:[#allocation11 + $0x8] sm:$0xff] %v637
    // Predicated region
    $region54: #{tpu_custom_call.1} parent=1 // pred_check
      %p640 = pneg %p86
    $region55: #{tpu_custom_call.1} parent=1 // pred_check_branch
      %642 = sbr.rel (%p640) target = $region57
    $region56: #{tpu_custom_call.1} parent=1 // pred_region
      %v643 = vld [vmem:[#allocation11] sm:$0xff]
      %v644 = vld [vmem:[#allocation11 + $0x8] sm:$0xff]
      %v645 = vld [vmem:[%s7] sm:$0x1]
      %v647 = vlaneseq
      %v648 = vshrl.u32 %v647, 7
      %v649 = vsub.s32 0, %v648
      %v650 = vrot.slane %v645, %v649
      %v652 = vadd.f32 %v643, %v650
      %v653 = vadd.f32 %v644, %v650
      %654 = vst [vmem:[#allocation11] sm:$0xff] %v652
      %655 = vst [vmem:[#allocation11 + $0x8] sm:$0xff] %v653
    $region57: #{tpu_custom_call.1} parent=1 // pred_fallthru
      _
    // Predicated region
    $region58: #{tpu_custom_call.1} parent=1 // pred_check
      _
    $region59: #{tpu_custom_call.1} parent=1 // pred_check_branch
      %657 = sbr.rel (0) target = $region61
    $region60: #{tpu_custom_call.1} parent=1 // pred_region
      %s659 = ssub.s32 256, 256
      %660 = vsyncadd [#allocation5], %s659
      %s661 = sshll.u32 [#allocation11], 4
      %s662 = int_to_ptr.vmem [resolvable:$true] %s661
      %667 = dma.vmem_to_hbm [thread:$0]  %s662, 256, %s8, [#allocation5], 128, 128, 8
    $region61: #{tpu_custom_call.1} parent=1 // pred_fallthru
      _
    // Predicated region
    $region62: #{tpu_custom_call.1} parent=1 // pred_check
      _
    $region63: #{tpu_custom_call.1} parent=1 // pred_check_branch
      %669 = sbr.rel (0) target = $region65
    $region64: #{tpu_custom_call.1} parent=1 // pred_region
      %670 = dma.done [#allocation5], 256
    $region65: #{tpu_custom_call.1} parent=1 // pred_fallthru
      _
    %671 = vsyncpa [#allocation4], 1
    %672 = vsyncpa [#allocation7], 1
    %673 = vsyncpa [#allocation10], 1
    %674 = vsyncpa [#allocation5], 1

</llo_original>
